<compile_context>
chip_gen: v7x
topology: tpu7x:2x2x1
jax: 0.10.0
libtpu: 0.0.40
codegen_flags: <defaults>
</compile_context>

<pallas_src>
import functools
import math

import jax
import jax.numpy as jnp
from jax.experimental import pallas as pl
from jax.experimental.pallas import tpu as pltpu


# Target per-tile footprint. 2 input + 2 output pipeline buffers of this size
# stay well under the default scoped-VMEM limit on every chip generation.
_TARGET_TILE_BYTES = 2 * 1024 * 1024


def _sublane_align(itemsize: int) -> int:
    # Sublane packing: 4-byte dtypes -> 8 rows, 2-byte -> 16, 1-byte -> 32.
    return {4: 8, 2: 16, 1: 32}.get(itemsize, 8)


def _choose_tile(extent: int, align: int, max_elems: int) -> int:
    """Largest divisor of `extent` that is a multiple of `align` and <= max_elems.
    Falls back to the full extent (always a legal block)."""
    if extent % align != 0:
        return extent
    max_elems = max(align, (max_elems // align) * align)
    if max_elems >= extent:
        return extent
    best = align
    i = 1
    while i * i <= extent:
        if extent % i == 0:
            for d in (i, extent // i):
                if d % align == 0 and d <= max_elems and d > best:
                    best = d
        i += 1
    return best


def _drop_path_kernel(scale_ref, x_ref, o_ref):
    # scale_ref: (B,) f32 scalar-prefetch SMEM ref; 0.0 or 1/keep_prob per sample.
    # x_ref / o_ref: (1, tT, tD) VMEM tiles for (sample b, row tile t, lane tile d).
    scale = scale_ref[pl.program_id(0)]
    # Memory-bound: multiply in f32, cast once on the store.
    o_ref[...] = (x_ref[...].astype(jnp.float32) * scale).astype(o_ref.dtype)


@functools.partial(jax.jit, static_argnames=("drop_prob", "training"))
def drop_path(x, key, drop_prob=0.0, training=False):
    """Pallas DropPath: per-sample (dim 0) stochastic depth. Same shape/dtype out."""
    if drop_prob is None or drop_prob == 0.0 or not training:
        return x

    keep_prob = 1.0 - drop_prob
    B = x.shape[0]
    keep = jax.random.bernoulli(key, p=keep_prob, shape=(B,))
    scale = keep.astype(jnp.float32) / jnp.float32(keep_prob)  # (B,) of {0, 1/keep_prob}

    orig_shape = x.shape
    # Collapse to (B, T, D); keep the last dim lane-dense. Contiguous reshapes
    # are layout-only (free).
    if x.ndim >= 2:
        D = x.shape[-1]
        T = math.prod(x.shape[1:-1]) if x.ndim > 2 else 1
    else:
        T, D = 1, 1
    if D % 128 != 0 and (T * D) % 128 == 0:
        # Re-slab the per-sample block into 128-lane rows -> unmasked stores.
        T, D = (T * D) // 128, 128
    x3 = x.reshape(B, T, D)

    itemsize = jnp.dtype(x.dtype).itemsize
    # Tile the lane dim first (bounds VMEM for very wide D), then the row dim.
    tD = _choose_tile(D, 128, max(128, _TARGET_TILE_BYTES // itemsize))
    tT = _choose_tile(
        T, _sublane_align(itemsize), max(1, _TARGET_TILE_BYTES // max(1, tD * itemsize))
    )

    grid_spec = pltpu.PrefetchScalarGridSpec(
        num_scalar_prefetch=1,
        grid=(B, T // tT, D // tD),
        in_specs=[pl.BlockSpec((1, tT, tD), lambda b, t, d, scale_ref: (b, t, d))],
        out_specs=pl.BlockSpec((1, tT, tD), lambda b, t, d, scale_ref: (b, t, d)),
    )

    out = pl.pallas_call(
        _drop_path_kernel,
        out_shape=jax.ShapeDtypeStruct((B, T, D), x.dtype),
        grid_spec=grid_spec,
        compiler_params=pltpu.CompilerParams(
            # Every axis is independent -> shard freely across v7x's two TensorCores.
            dimension_semantics=("parallel", "parallel", "parallel"),
        ),
    )(scale, x3)
    return out.reshape(orig_shape)


class DropPath:
    """Drop paths (Stochastic Depth) per sample, Pallas-backed."""

    def __init__(self, drop_prob=None):
        self.drop_prob = drop_prob
        self.training = True

    def __call__(self, x, key):
        p = 0.0 if self.drop_prob is None else float(self.drop_prob)
        return drop_path(x, key, drop_prob=p, training=self.training)

    def extra_repr(self):
        return "p={}".format(self.drop_prob)


if __name__ == "__main__":
    key = jax.random.PRNGKey(0)
    k_x, k_drop, k_x2 = jax.random.split(key, 3)

    # --- f32, lane-aligned case -------------------------------------------
    B, T, D = 2, 8, 128
    x = jax.random.normal(k_x, (B, T, D), dtype=jnp.float32)

    mod = DropPath(drop_prob=0.25)
    out = jax.block_until_ready(mod(x, k_drop))
    assert out.shape == x.shape and out.dtype == x.dtype

    keep_prob = 0.75
    keep = jax.random.bernoulli(k_drop, p=keep_prob, shape=(B,))
    scale_ref = keep.astype(jnp.float32) / keep_prob
    ref = x * scale_ref[:, None, None]
    assert jnp.allclose(out, ref, atol=1e-6), "f32 mismatch vs reference"

    # --- bf16, non-multiple-of-128 trailing dim (exercises re-slab path) ---
    B2, T2, D2 = 2, 16, 64
    x2 = jax.random.normal(k_x2, (B2, T2, D2), dtype=jnp.bfloat16)
    out2 = jax.block_until_ready(mod(x2, k_drop))
    keep2 = jax.random.bernoulli(k_drop, p=keep_prob, shape=(B2,))
    scale2 = keep2.astype(jnp.float32) / keep_prob
    ref2 = (x2.astype(jnp.float32) * scale2[:, None, None]).astype(jnp.bfloat16)
    assert out2.shape == x2.shape and out2.dtype == x2.dtype
    assert jnp.array_equal(out2, ref2), "bf16 mismatch vs reference"

    # --- 2-D input (B, D) path ----------------------------------------------
    x4 = jax.random.normal(k_x, (4, 256), dtype=jnp.float32)
    out4 = jax.block_until_ready(mod(x4, k_drop))
    keep4 = jax.random.bernoulli(k_drop, p=keep_prob, shape=(4,))
    ref4 = x4 * (keep4.astype(jnp.float32) / keep_prob)[:, None]
    assert jnp.allclose(out4, ref4, atol=1e-6), "2-D mismatch vs reference"

    # --- eval mode (or drop_prob=0) is the identity -------------------------
    mod.training = False
    out_eval = jax.block_until_ready(mod(x, k_drop))
    assert jnp.array_equal(out_eval, x)

    print("KERNEL_OK")
</pallas_src>

<mosaic_0001>
module attributes {stable_mosaic.version = 11 : i64} {
  func.func @_drop_path_kernel(%arg0: i32, %arg1: i32, %arg2: i32, %arg3: memref<2xf32, #tpu.memory_space<smem>>, %arg4: memref<1x8x128xf32, #tpu.memory_space<vmem>>, %arg5: memref<1x8x128xf32, #tpu.memory_space<vmem>>) attributes {dimension_semantics = [#tpu.dimension_semantics<parallel>, #tpu.dimension_semantics<parallel>, #tpu.dimension_semantics<parallel>], iteration_bounds = array<i64: 2, 1, 1>, scalar_prefetch = 1 : i64, scratch_operands = 0 : i64, tpu.core_type = #tpu.core_type<tc>, window_params = [{transform_indices = @transform_0, window_bounds = array<i64: 1, 8, 128>}, {transform_indices = @transform_1, window_bounds = array<i64: 1, 8, 128>}]} {
    %0 = arith.index_cast %arg0 : i32 to index
    %1 = memref.load %arg3[%0] : memref<2xf32, #tpu.memory_space<smem>>
    %c0 = arith.constant 0 : index
    %c0_0 = arith.constant 0 : index
    %c0_1 = arith.constant 0 : index
    %2 = vector.load %arg4[%c0, %c0_0, %c0_1] : memref<1x8x128xf32, #tpu.memory_space<vmem>>, vector<1x8x128xf32>
    %3 = vector.broadcast %1 : f32 to vector<1x8x128xf32>
    %4 = arith.mulf %2, %3 : vector<1x8x128xf32>
    %c0_2 = arith.constant 0 : index
    %c0_3 = arith.constant 0 : index
    %c0_4 = arith.constant 0 : index
    %5 = vector.load %arg5[%c0_2, %c0_3, %c0_4] : memref<1x8x128xf32, #tpu.memory_space<vmem>>, vector<1x8x128xf32>
    tpu.vector_store %arg5[%c0_2, %c0_3, %c0_4], %4 {strides = array<i32>} : memref<1x8x128xf32, #tpu.memory_space<vmem>>, vector<1x8x128xf32>,
    return
  }
  func.func @transform_0(%arg0: i32, %arg1: i32, %arg2: i32, %arg3: memref<2xf32, #tpu.memory_space<smem>>) -> (i32, i32, i32) {
    %c0_i32 = arith.constant 0 : i32
    return %arg0, %arg1, %arg2 : i32, i32, i32
  }
  func.func @transform_1(%arg0: i32, %arg1: i32, %arg2: i32, %arg3: memref<2xf32, #tpu.memory_space<smem>>) -> (i32, i32, i32) {
    %c0_i32 = arith.constant 0 : i32
    return %arg0, %arg1, %arg2 : i32, i32, i32
  }
}

</mosaic_0001>

<llo_original>
// kernel: drop_path.1
$region0: #{drop_path.1}
  #allocation0 [shape = 'u32[]', space=smem, size = 0x4, offset = 0x4, fixed_abs, tag = 'smem constant byte address 0x4 - core index']
  #allocation1 [shape = 'u32[144,128]{1,0:T(1,128)}', space=vmem, size = 0x12000, scoped, tag = 'internal scratch']
  #allocation2 [shape = 's32[1]{0}', space=sflag, size = 0x4, scoped, tag = 'scoped memory for drop_path.1']
  #allocation3 [shape = 'u8[512]{0}', space=smem, size = 0x200, scoped, tag = 'prefetched SMEM operand 0']
  %s0 = inlined_call_operand.vmem [shape: f32[2], index: 0, kind: input, shape index: {}]
  %s1 = inlined_call_operand.vmem [shape: f32[2,8,128], index: 1, kind: input, shape index: {}]
  %s2 = inlined_call_operand.hbm [shape: f32[2,8,128], index: 2, kind: output, shape index: {}]
  %s3 = sld [smem:[#allocation0]]
  $region37: #{drop_path.1} parent=0
    _
  %s5 = ssub.s32 1, %s3
  %s6 = scalar_select 0, %s5, %s3
  %s7 = sshll.u32 %s0, 4
  %s8 = int_to_ptr.vmem [resolvable:$true] %s7
  %10 = dma.vmem_to_smem %s8, 16, [#allocation3], [#allocation2]
  %11 = dma.done [#allocation2], 16
  %12 = sfence
  $region1: #{drop_path.1} parent=0
    #allocation4 [shape = 'u8[8192]{0}', space=vmem, size = 0x2000, scoped, tag = 'output window, operand 0']
    #allocation5 [shape = 's32[2]{0}', space=sflag, size = 0x8, scoped, tag = 'scoped memory for drop_path.1']
    %13 = vsyncpa [#allocation5], 0
    %s14 = scalar_lea.sflag [#allocation5], 1
    %15 = vsyncpa %s14, 0
    loop: start=0, step=1, limit=4
    $region2: #{drop_path.1} parent=1 // loop_pre_header
      _
    $region3: #{drop_path.1} parent=1 // loop_header
      %s17 = sphi 0, %s21
      %p18 = scmp.ge.s32.totalorder %s17, 4
      %s24 = sphi 0, %s43
      %s25 = sphi 0, %s39
      %s26 = sphi 0, %s35
      %s27 = sphi 0, %s24
      %s28 = sphi 0, %s25
      %s29 = sphi 0, %s26
      %s30 = sphi 0, %s27
      %s31 = sphi 0, %s28
      %s32 = sphi 0, %s29
      %s50 = sphi 0, %s52
      %s53 = sphi 0, %s50
      %s54 = sphi 0, %s53
      %s70 = sphi 0, %s54
      %s80 = sphi 0, %s82
      %s83 = sphi 0, %s80
      %s84 = sphi 0, %s83
      %s100 = sphi 0, %s84
    $region4: #{drop_path.1} parent=1 // loop_header_branch
      %20 = sbr.rel (%p18) target = $region8
    $region5: #{drop_path.1} parent=1 // loop_body
      %s22 = ssub.s32 %s17, 1
      %s23 = ssub.s32 %s17, 2
      %s33 = sadd.s32 1, %s26
      %p34 = scmp.ge.s32.totalorder %s33, 1
      %s35 = scalar_select %p34, 0, %s33
      %s36 = sadd.s32 1, %s25
      %s37 = scalar_select %p34, %s36, %s25
      %p38 = scmp.ge.s32.totalorder %s37, 1
      %s39 = scalar_select %p38, 0, %s37
      %s40 = sadd.s32 1, %s24
      %s41 = scalar_select %p38, %s40, %s24
      %p42 = scmp.ge.s32.totalorder %s41, 2
      %s43 = scalar_select %p42, 0, %s41
      %s44 = ssub.s32 %s24, %s43
      %s45 = ssub.s32 %s25, %s39
      %s46 = sor.u32 %s44, %s45
      %s47 = ssub.s32 %s26, %s35
      %s48 = sor.u32 %s46, %s47
      %p49 = scmp.eq.s32.totalorder %s48, 0
      %s51 = sadd.s32 %s50, 1
      %s52 = scalar_select %p49, %s50, %s51
      %p55 = pneg %p49
      %p56 = scmp.eq.s32.totalorder %s17, 1
      %p57 = por %p55, %p56
      %p58 = scmp.ne.s32.totalorder %s50, %s53
      %p59 = scmp.eq.s32.totalorder %s17, 0
      %p60 = por %p58, %p59
      %p61 = scmp.ne.s32.totalorder %s50, %s53
      %p62 = scmp.eq.s32.totalorder %s22, 1
      %p63 = por %p61, %p62
      %p64 = scmp.ne.s32.totalorder %s53, %s54
      %p65 = scmp.eq.s32.totalorder %s22, 0
      %p66 = por %p64, %p65
      %p67 = scmp.ne.s32.totalorder %s53, %s54
      %p68 = scmp.eq.s32.totalorder %s23, 1
      %p69 = por %p67, %p68
      %p71 = scmp.ne.s32.totalorder %s54, %s70
      %p72 = scmp.eq.s32.totalorder %s23, 0
      %p73 = por %p71, %p72
      %s74 = ssub.s32 %s24, %s43
      %s75 = ssub.s32 %s25, %s39
      %s76 = sor.u32 %s74, %s75
      %s77 = ssub.s32 %s26, %s35
      %s78 = sor.u32 %s76, %s77
      %p79 = scmp.eq.s32.totalorder %s78, 0
      %s81 = sadd.s32 %s80, 1
      %s82 = scalar_select %p79, %s80, %s81
      %p85 = pneg %p79
      %p86 = scmp.eq.s32.totalorder %s17, 1
      %p87 = por %p85, %p86
      %p88 = scmp.ne.s32.totalorder %s80, %s83
      %p89 = scmp.eq.s32.totalorder %s17, 0
      %p90 = por %p88, %p89
      %p91 = scmp.ne.s32.totalorder %s80, %s83
      %p92 = scmp.eq.s32.totalorder %s22, 1
      %p93 = por %p91, %p92
      %p94 = scmp.ne.s32.totalorder %s83, %s84
      %p95 = scmp.eq.s32.totalorder %s22, 0
      %p96 = por %p94, %p95
      %p97 = scmp.ne.s32.totalorder %s83, %s84
      %p98 = scmp.eq.s32.totalorder %s23, 1
      %p99 = por %p97, %p98
      %p101 = scmp.ne.s32.totalorder %s84, %s100
      %p102 = scmp.eq.s32.totalorder %s23, 0
      %p103 = por %p101, %p102
      %p104 = scmp.le.s32.totalorder 1, %s17
      %p105 = scmp.lt.s32.totalorder %s17, 3
      %p106 = pnand %p104, %p105
      %p107 = pneg %p106
      // Predicated region
      $region9: #{drop_path.1} parent=5 // pred_check
        _
      $region10: #{drop_path.1} parent=5 // pred_check_branch
        %109 = sbr.rel (%p106) target = $region12
      $region11: #{drop_path.1} parent=5 // pred_region
        %s110 = ssub.s32 %s17, 1
      $region12: #{drop_path.1} parent=5 // pred_fallthru
        _
      %p111 = scmp.lt.s32.totalorder %s17, 2
      // Predicated region
      $region13: #{drop_path.1} parent=5 // pred_check
        %p112 = pneg %p111
      $region14: #{drop_path.1} parent=5 // pred_check_branch
        %114 = sbr.rel (%p112) target = $region16
      $region15: #{drop_path.1} parent=5 // pred_region
        // Predicated region
        $region17: #{drop_path.1} parent=15 // pred_check
          %p115 = pneg %p60
        $region18: #{drop_path.1} parent=15 // pred_check_branch
          %117 = sbr.rel (%p115) target = $region20
        $region19: #{drop_path.1} parent=15 // pred_region
          %p118 = scmp.lt.s32.totalorder %s24, 1
          %s119 = scalar_select %p118, %s24, 1
          %p120 = scmp.lt.s32.totalorder %s25, 0
          %s121 = scalar_select %p120, %s25, 0
          %p122 = scmp.lt.s32.totalorder %s26, 0
          %s123 = scalar_select %p122, %s26, 0
          %s124 = sadd.s32 %s123, %s121
          %s125 = sadd.s32 %s124, %s119
          %s126 = smul.addr %s125, 8
          %s127 = scalar_lea.vmem %s1, %s126
        $region20: #{drop_path.1} parent=15 // pred_fallthru
          _
      $region16: #{drop_path.1} parent=5 // pred_fallthru
        _
      %p128 = scmp.le.s32.totalorder 1, %s17
      %p129 = scmp.lt.s32.totalorder %s17, 3
      %p130 = pnand %p128, %p129
      %p131 = pneg %p130
      // Predicated region
      $region21: #{drop_path.1} parent=5 // pred_check
        _
      $region22: #{drop_path.1} parent=5 // pred_check_branch
        %133 = sbr.rel (%p130) target = $region24
      $region23: #{drop_path.1} parent=5 // pred_region
        %s134 = ssub.s32 %s17, 1
        %p135 = scmp.lt.s32.totalorder %s27, 1
        %s136 = scalar_select %p135, %s27, 1
        %p137 = scmp.lt.s32.totalorder %s28, 0
        %s138 = scalar_select %p137, %s28, 0
        %p139 = scmp.lt.s32.totalorder %s29, 0
        %s140 = scalar_select %p139, %s29, 0
        %s141 = sadd.s32 %s140, %s138
        %s142 = sadd.s32 %s141, %s136
        %s143 = smul.addr %s142, 8
        %s144 = scalar_lea.vmem %s1, %s143
        %p145 = pneg %p66
        %p146 = pneg %p63
        %p147 = pneg %p96
        %p148 = pneg %p93
        %s149 = sand.u32 %s83, 1
        %s150 = scalar_lea.sflag [#allocation5], %s149
        %s151 = sand.u32 %s83, 1
        %s152 = smul.addr %s151, 8
        %s153 = scalar_lea.vmem [#allocation4], %s152
        %p154 = scmp.lt.s32.totalorder %s27, 1
        %s155 = scalar_select %p154, %s27, 1
        %p156 = scmp.lt.s32.totalorder %s28, 0
        %s157 = scalar_select %p156, %s28, 0
        %p158 = scmp.lt.s32.totalorder %s29, 0
        %s159 = scalar_select %p158, %s29, 0
        %s160 = sadd.s32 %s159, %s157
        %s161 = sadd.s32 %s160, %s155
        %s162 = smul.addr %s161, 8
        %s163 = scalar_lea.vmem %s1, %s162
        %s164 = sld [smem:[#allocation3 + %s27]]
        %v165 = vld [vmem:[%s163] sm:$0xff]
        %v166 = vstv %s164
        %v167 = vmul.f32 %v165, %v166
        %168 = vst [vmem:[%s153] sm:$0xff] %v167
        %s169 = sand.u32 %s83, 1
        %s170 = scalar_lea.sflag [#allocation5], %s169
        %s171 = sand.u32 %s83, 1
        %s172 = smul.addr %s171, 8
        %s173 = scalar_lea.vmem [#allocation4], %s172
        // Predicated region
        $region25: #{drop_path.1} parent=23 // pred_check
          %p174 = pneg %p93
        $region26: #{drop_path.1} parent=23 // pred_check_branch
          %176 = sbr.rel (%p174) target = $region28
        $region27: #{drop_path.1} parent=23 // pred_region
          %s178 = ssub.s32 128, 128
          %179 = vsyncadd %s170, %s178
          %s180 = sadd.s32 %s29, %s28
          %s181 = sadd.s32 %s180, %s27
          %s182 = smul.addr %s181, 128
          %s183 = scalar_lea.hbm %s2, %s182
          %s185 = sshll.u32 %s173, 4
          %s186 = int_to_ptr.vmem [resolvable:$true] %s185
          %188 = dma.vmem_to_hbm [thread:$0]  %s186, 128, %s183, %s170
        $region28: #{drop_path.1} parent=23 // pred_fallthru
          _
      $region24: #{drop_path.1} parent=5 // pred_fallthru
        _
      %p189 = scmp.le.s32.totalorder 2, %s17
      // Predicated region
      $region29: #{drop_path.1} parent=5 // pred_check
        %p190 = pneg %p189
      $region30: #{drop_path.1} parent=5 // pred_check_branch
        %192 = sbr.rel (%p190) target = $region32
      $region31: #{drop_path.1} parent=5 // pred_region
        %s193 = ssub.s32 %s17, 2
        // Predicated region
        $region33: #{drop_path.1} parent=31 // pred_check
          %p194 = pneg %p99
        $region34: #{drop_path.1} parent=31 // pred_check_branch
          %196 = sbr.rel (%p194) target = $region36
        $region35: #{drop_path.1} parent=31 // pred_region
          %s197 = sand.u32 %s84, 1
          %s198 = scalar_lea.sflag [#allocation5], %s197
          %s199 = sand.u32 %s84, 1
          %s200 = smul.addr %s199, 8
          %s201 = scalar_lea.vmem [#allocation4], %s200
          %202 = dma.done %s198, 128
        $region36: #{drop_path.1} parent=31 // pred_fallthru
          _
      $region32: #{drop_path.1} parent=5 // pred_fallthru
        _
    $region6: #{drop_path.1} parent=1 // loop_footer
      %s21 = sadd.s32 1, %s17
    $region7: #{drop_path.1} parent=1 // loop_footer_branch
      %16 = sbr.rel target = $region3
    $region8: #{drop_path.1} parent=1 // loop_exit
      _
    %203 = vsyncpa [#allocation5], 1
    %s204 = scalar_lea.sflag [#allocation5], 1
    %205 = vsyncpa %s204, 1

</llo_original>
